<compile_context>
chip_gen: v5e
topology: v5e:2x2
jax: 0.10.0
libtpu: 0.0.40
codegen_flags: <defaults>
</compile_context>

<pallas_src>
import numpy as np
import jax
import jax.numpy as jnp
from jax import lax
from jax.experimental import pallas as pl
from jax.experimental.pallas import tpu as pltpu

EPS = 1e-5


# --------------------------------------------------------------------------
# in-kernel helpers
# --------------------------------------------------------------------------
def _row_shifted_ext(v, H):
    """(H, L) -> (H, 3L): columns [row h-1 | row h | row h+1], zeros at H edges.

    Row shifts use pltpu.roll (XLU slot) + an iota mask (VPU), overlapping the
    MXU instead of occupying it with (H,H) shift matmuls.
    """
    row = lax.broadcasted_iota(jnp.int32, v.shape, 0)
    v_dn = jnp.where(row == 0, 0.0, pltpu.roll(v, shift=1, axis=0))          # row h-1
    v_up = jnp.where(row == H - 1, 0.0, pltpu.roll(v, shift=H - 1, axis=0))  # row h+1
    return jnp.concatenate([v_dn, v, v_up], axis=1)


def _lane_group_allreduce(row, C, n_groups):
    """Cyclic butterfly sum over the n_groups lanes sharing a channel (lane % C).

    row: (R, L) with L = n_groups * C and n_groups a power of two.  After
    log2(n_groups) roll+add steps every lane holds its channel's total,
    already replicated per lane (no broadcast matmul needed afterwards).
    """
    out = row
    shift = C
    for _ in range(int(n_groups).bit_length() - 1):
        out = out + pltpu.roll(out, shift=shift, axis=1)
        shift *= 2
    return out


def _make_kernel(H, L, C, n_groups):
    inv_n = 1.0 / float(H * n_groups)          # N = B*H*W elements per channel

    def bn_stats(acc, gb_ref):
        """Training-mode BN (biased var, two-pass) -> (centered, scale_row, beta_row)."""
        mean = _lane_group_allreduce(
            jnp.sum(acc, axis=0, keepdims=True), C, n_groups) * inv_n
        d = acc - mean
        var = _lane_group_allreduce(
            jnp.sum(d * d, axis=0, keepdims=True), C, n_groups) * inv_n
        scale = gb_ref[0:1, :] * lax.rsqrt(var + EPS)   # gamma * rsqrt(var+eps) (EUP)
        return d, scale, gb_ref[1:2, :]

    def kernel(x_ref, w1_ref, w2_ref, gb1_ref, gb2_ref, out_ref):
        x = x_ref[...]                                                # f32 (H, L)

        # conv1: single (H,3L)x(3L,L) bf16 MXU matmul, f32 accumulation
        acc1 = jnp.dot(_row_shifted_ext(x, H).astype(jnp.bfloat16), w1_ref[...],
                       preferred_element_type=jnp.float32)
        # bn1 -> relu (no MXU ops)
        d1, sc1, sh1 = bn_stats(acc1, gb1_ref)
        h1 = jnp.maximum(d1 * sc1 + sh1, 0.0)

        # conv2
        acc2 = jnp.dot(_row_shifted_ext(h1, H).astype(jnp.bfloat16), w2_ref[...],
                       preferred_element_type=jnp.float32)
        # bn2 -> +identity -> relu (residual add uses the raw f32 input slab)
        d2, sc2, sh2 = bn_stats(acc2, gb2_ref)
        out_ref[...] = jnp.maximum(d2 * sc2 + sh2 + x, 0.0)

    return kernel


# --------------------------------------------------------------------------
# hoisted weight preprocessing (once per weight update, not per forward)
# --------------------------------------------------------------------------
def _stacked_banded_weight(w_hwio, B, W):
    """Stacked banded batch-block-diagonal weight: (3*B*W*Cin, B*W*Cout), bf16.

    Row block kh in {0,1,2} multiplies the [row h-1 | row h | row h+1] copy of
    the slab; the SAME zero-padding along W is folded into the band.
    # TODO(synk): kron(eye(B), .) is B x structural zeros (and the band ~W/3 x);
    # for real ResNet sizes fold batch into a grid and stream (W*Cin, W*Cout) tiles.
    """
    _, _, Cin, Cout = w_hwio.shape
    band = np.zeros((W, 3, W), np.float32)                  # band[wi, kw, wo]
    for wo in range(W):
        for kw in range(3):
            wi = wo + kw - 1                                # SAME padding along W
            if 0 <= wi < W:
                band[wi, kw, wo] = 1.0
    band = jnp.asarray(band)
    eye_b = jnp.eye(B, dtype=jnp.float32)
    blocks = []
    for kh in range(3):
        r4 = jnp.einsum('xkw,kio->xiwo', band, w_hwio[kh].astype(jnp.float32))
        blocks.append(jnp.kron(eye_b, r4.reshape(W * Cin, W * Cout)))
    return jnp.concatenate(blocks, axis=0).astype(jnp.bfloat16)


def prepare_residual_block_params(w1_hwio, g1, b1, w2_hwio, g2, b2, *, batch, width):
    """Precompute kernel-ready weight slabs; reuse across forward passes."""
    reps = batch * width

    def gb(g, b):   # (2, L): row 0 = gamma tiled per lane, row 1 = beta tiled per lane
        return jnp.stack([jnp.tile(g.astype(jnp.float32), reps),
                          jnp.tile(b.astype(jnp.float32), reps)], axis=0)

    return dict(w1=_stacked_banded_weight(w1_hwio, batch, width),
                w2=_stacked_banded_weight(w2_hwio, batch, width),
                gb1=gb(g1, b1), gb2=gb(g2, b2))


# --------------------------------------------------------------------------
# forward wrapper
# --------------------------------------------------------------------------
def residual_block_apply(x_nhwc, params):
    B, H, W, C = x_nhwc.shape
    L = B * W * C
    assert L % C == 0 and params['gb1'].shape == (2, L)
    n_groups = L // C                                   # = B*W
    assert n_groups & (n_groups - 1) == 0, "roll-tree BN reduction needs B*W = 2^k"
    f32 = jnp.float32

    # lane-packed slab: slab[h, b*W*C + w*C + c] = x[b, h, w, c]  (fully lane-dense)
    x_slab = jnp.transpose(x_nhwc.astype(f32), (1, 0, 2, 3)).reshape(H, L)

    # cost estimate + generation-aware VMEM sizing
    flops = 2 * (2 * H * (3 * L) * L) + 40 * H * L
    bytes_accessed = 4 * 2 * H * L + 2 * 2 * (3 * L) * L + 4 * 2 * 2 * L
    work_bytes = 4 * 8 * H * (3 * L) + 2 * 2 * (3 * L) * L + 4 * 4 * L
    try:
        vmem_cap = int(pltpu.get_tpu_info().vmem_capacity_bytes)
    except Exception:                                   # conservative fallback
        vmem_cap = 64 * 1024 * 1024
    vmem_limit = int(min(max(8 * work_bytes, 4 * 1024 * 1024), (vmem_cap * 9) // 10))

    # TODO(synk): at real sizes add a "parallel" grid over batch/H tiles so v7x's
    # two TensorCores are both used; a single grid point is right at this size.
    vmem = pl.BlockSpec(memory_space=pltpu.MemorySpace.VMEM)
    out_slab = pl.pallas_call(
        _make_kernel(H, L, C, n_groups),
        out_shape=jax.ShapeDtypeStruct((H, L), f32),
        in_specs=[vmem] * 5,
        out_specs=vmem,
        compiler_params=pltpu.CompilerParams(vmem_limit_bytes=vmem_limit),
        cost_estimate=pl.CostEstimate(flops=flops, transcendentals=2 * L,
                                      bytes_accessed=bytes_accessed),
    )(x_slab, params['w1'], params['w2'], params['gb1'], params['gb2'])

    return out_slab.reshape(H, B, W, C).transpose(1, 0, 2, 3)   # back to NHWC


# --------------------------------------------------------------------------
# pure-JAX reference (same semantics) for verification
# --------------------------------------------------------------------------
def residual_block_reference(x_nhwc, w1_hwio, g1, b1, w2_hwio, g2, b2):
    def conv(x, w):
        return lax.conv_general_dilated(
            x, w, window_strides=(1, 1), padding='SAME',
            dimension_numbers=('NHWC', 'HWIO', 'NHWC'))

    def bn(x, g, b):
        m = jnp.mean(x, axis=(0, 1, 2), keepdims=True)
        v = jnp.mean((x - m) ** 2, axis=(0, 1, 2), keepdims=True)
        return (x - m) * lax.rsqrt(v + EPS) * g + b

    h = jax.nn.relu(bn(conv(x_nhwc, w1_hwio), g1, b1))
    h = bn(conv(h, w2_hwio), g2, b2)
    return jax.nn.relu(h + x_nhwc)


if __name__ == "__main__":
    B, C, H, W = 2, 4, 16, 16    # in_channels == out_channels == 4, stride=1

    key = jax.random.PRNGKey(0)
    kx, k1, k2, kg1, kb1, kg2, kb2 = jax.random.split(key, 7)

    # PyTorch-style NCHW input, OIHW weights -> convert at the boundary.
    x_nchw = jax.random.normal(kx, (B, C, H, W), dtype=jnp.float32)
    w1_oihw = jax.random.normal(k1, (C, C, 3, 3), dtype=jnp.float32) * 0.1
    w2_oihw = jax.random.normal(k2, (C, C, 3, 3), dtype=jnp.float32) * 0.1
    g1 = 1.0 + 0.1 * jax.random.normal(kg1, (C,), dtype=jnp.float32)
    b1 = 0.1 * jax.random.normal(kb1, (C,), dtype=jnp.float32)
    g2 = 1.0 + 0.1 * jax.random.normal(kg2, (C,), dtype=jnp.float32)
    b2 = 0.1 * jax.random.normal(kb2, (C,), dtype=jnp.float32)

    x_nhwc = jnp.transpose(x_nchw, (0, 2, 3, 1))        # NCHW -> NHWC
    w1_hwio = jnp.transpose(w1_oihw, (2, 3, 1, 0))      # OIHW -> HWIO
    w2_hwio = jnp.transpose(w2_oihw, (2, 3, 1, 0))

    # weight preprocessing hoisted out of the per-forward hot path
    params = prepare_residual_block_params(w1_hwio, g1, b1, w2_hwio, g2, b2,
                                           batch=B, width=W)
    params = jax.tree_util.tree_map(jax.block_until_ready, params)

    out = residual_block_apply(x_nhwc, params)
    out = jax.block_until_ready(out)

    ref = residual_block_reference(x_nhwc, w1_hwio, g1, b1, w2_hwio, g2, b2)
    ref = jax.block_until_ready(ref)

    assert out.shape == (B, H, W, C)
    # bf16 MXU operands (f32 accumulation) => relaxed parity vs. the f32 reference.
    err = float(jnp.max(jnp.abs(out - ref)))
    assert jnp.allclose(out, ref, atol=5e-2, rtol=5e-2), f"max abs err {err}"

    # Round-trip back to NCHW to match the PyTorch output convention.
    _ = jnp.transpose(out, (0, 3, 1, 2))

    print("KERNEL_OK")
</pallas_src>

<mosaic_0001>
module attributes {stable_mosaic.version = 11 : i64} {
  func.func @kernel(%arg0: memref<16x128xf32, #tpu.memory_space<vmem>>, %arg1: memref<384x128xbf16, #tpu.memory_space<vmem>>, %arg2: memref<384x128xbf16, #tpu.memory_space<vmem>>, %arg3: memref<2x128xf32, #tpu.memory_space<vmem>>, %arg4: memref<2x128xf32, #tpu.memory_space<vmem>>, %arg5: memref<16x128xf32, #tpu.memory_space<vmem>>) attributes {dimension_semantics = [], scalar_prefetch = 0 : i64, scratch_operands = 0 : i64, tpu.core_type = #tpu.core_type<tc>} {
    %c0 = arith.constant 0 : index
    %c0_0 = arith.constant 0 : index
    %0 = vector.load %arg0[%c0, %c0_0] : memref<16x128xf32, #tpu.memory_space<vmem>>, vector<16x128xf32>
    %1 = tpu.iota {dimensions = array<i32: 0>} : vector<16x128xi32>
    %c0_i32 = arith.constant 0 : i32
    %2 = vector.broadcast %c0_i32 : i32 to vector<16x128xi32>
    %3 = arith.cmpi eq, %1, %2 : vector<16x128xi32>
    %c1_i32 = arith.constant 1 : i32
    %4 = tpu.dynamic_rotate %0 by %c1_i32 dim 0 : vector<16x128xf32>, i32 -> vector<16x128xf32>
    %cst = arith.constant 0.000000e+00 : f32
    %5 = vector.broadcast %cst : f32 to vector<16x128xf32>
    %6 = arith.select %3, %5, %4 : vector<16x128xi1>, vector<16x128xf32>
    %c15_i32 = arith.constant 15 : i32
    %7 = vector.broadcast %c15_i32 : i32 to vector<16x128xi32>
    %8 = arith.cmpi eq, %1, %7 : vector<16x128xi32>
    %c15_i32_1 = arith.constant 15 : i32
    %9 = tpu.dynamic_rotate %0 by %c15_i32_1 dim 0 : vector<16x128xf32>, i32 -> vector<16x128xf32>
    %cst_2 = arith.constant 0.000000e+00 : f32
    %10 = vector.broadcast %cst_2 : f32 to vector<16x128xf32>
    %11 = arith.select %8, %10, %9 : vector<16x128xi1>, vector<16x128xf32>
    %12 = tpu.concatenate %6, %0, %11 in 1 : vector<16x128xf32>, vector<16x128xf32>, vector<16x128xf32> -> vector<16x384xf32>
    %13 = arith.truncf %12 : vector<16x384xf32> to vector<16x384xbf16>
    %c0_3 = arith.constant 0 : index
    %c0_4 = arith.constant 0 : index
    %14 = vector.load %arg1[%c0_3, %c0_4] : memref<384x128xbf16, #tpu.memory_space<vmem>>, vector<384x128xbf16>
    %cst_5 = arith.constant dense<0.000000e+00> : vector<16x128xf32>
    %15 = tpu.matmul %13, %14, %cst_5 {dimension_numbers = #tpu.dot_dimension_numbers<[1], [0], [0], [1], [0, 0, 1, 1], [], []>} : vector<16x384xbf16>, vector<384x128xbf16>, vector<16x128xf32> -> vector<16x128xf32>
    %cst_6 = arith.constant dense<0.000000e+00> : vector<128xf32>
    %16 = vector.multi_reduction <add>, %15, %cst_6 [0] : vector<16x128xf32> to vector<128xf32>
    %17 = vector.shape_cast %16 : vector<128xf32> to vector<1x128xf32>
    %c4_i32 = arith.constant 4 : i32
    %18 = tpu.dynamic_rotate %17 by %c4_i32 dim 1 : vector<1x128xf32>, i32 -> vector<1x128xf32>
    %19 = arith.addf %17, %18 : vector<1x128xf32>
    %c8_i32 = arith.constant 8 : i32
    %20 = tpu.dynamic_rotate %19 by %c8_i32 dim 1 : vector<1x128xf32>, i32 -> vector<1x128xf32>
    %21 = arith.addf %19, %20 : vector<1x128xf32>
    %c16_i32 = arith.constant 16 : i32
    %22 = tpu.dynamic_rotate %21 by %c16_i32 dim 1 : vector<1x128xf32>, i32 -> vector<1x128xf32>
    %23 = arith.addf %21, %22 : vector<1x128xf32>
    %c32_i32 = arith.constant 32 : i32
    %24 = tpu.dynamic_rotate %23 by %c32_i32 dim 1 : vector<1x128xf32>, i32 -> vector<1x128xf32>
    %25 = arith.addf %23, %24 : vector<1x128xf32>
    %c64_i32 = arith.constant 64 : i32
    %26 = tpu.dynamic_rotate %25 by %c64_i32 dim 1 : vector<1x128xf32>, i32 -> vector<1x128xf32>
    %27 = arith.addf %25, %26 : vector<1x128xf32>
    %cst_7 = arith.constant 0.001953125 : f32
    %28 = vector.broadcast %cst_7 : f32 to vector<1x128xf32>
    %29 = arith.mulf %27, %28 : vector<1x128xf32>
    %30 = vector.broadcast %29 : vector<1x128xf32> to vector<16x128xf32>
    %31 = arith.subf %15, %30 : vector<16x128xf32>
    %32 = arith.mulf %31, %31 : vector<16x128xf32>
    %cst_8 = arith.constant dense<0.000000e+00> : vector<128xf32>
    %33 = vector.multi_reduction <add>, %32, %cst_8 [0] : vector<16x128xf32> to vector<128xf32>
    %34 = vector.shape_cast %33 : vector<128xf32> to vector<1x128xf32>
    %c4_i32_9 = arith.constant 4 : i32
    %35 = tpu.dynamic_rotate %34 by %c4_i32_9 dim 1 : vector<1x128xf32>, i32 -> vector<1x128xf32>
    %36 = arith.addf %34, %35 : vector<1x128xf32>
    %c8_i32_10 = arith.constant 8 : i32
    %37 = tpu.dynamic_rotate %36 by %c8_i32_10 dim 1 : vector<1x128xf32>, i32 -> vector<1x128xf32>
    %38 = arith.addf %36, %37 : vector<1x128xf32>
    %c16_i32_11 = arith.constant 16 : i32
    %39 = tpu.dynamic_rotate %38 by %c16_i32_11 dim 1 : vector<1x128xf32>, i32 -> vector<1x128xf32>
    %40 = arith.addf %38, %39 : vector<1x128xf32>
    %c32_i32_12 = arith.constant 32 : i32
    %41 = tpu.dynamic_rotate %40 by %c32_i32_12 dim 1 : vector<1x128xf32>, i32 -> vector<1x128xf32>
    %42 = arith.addf %40, %41 : vector<1x128xf32>
    %c64_i32_13 = arith.constant 64 : i32
    %43 = tpu.dynamic_rotate %42 by %c64_i32_13 dim 1 : vector<1x128xf32>, i32 -> vector<1x128xf32>
    %44 = arith.addf %42, %43 : vector<1x128xf32>
    %cst_14 = arith.constant 0.001953125 : f32
    %45 = vector.broadcast %cst_14 : f32 to vector<1x128xf32>
    %46 = arith.mulf %44, %45 : vector<1x128xf32>
    %c0_15 = arith.constant 0 : index
    %c0_16 = arith.constant 0 : index
    %47 = vector.load %arg3[%c0_15, %c0_16] : memref<2x128xf32, #tpu.memory_space<vmem>>, vector<1x128xf32>
    %cst_17 = arith.constant 9.99999974E-6 : f32
    %48 = vector.broadcast %cst_17 : f32 to vector<1x128xf32>
    %49 = arith.addf %46, %48 : vector<1x128xf32>
    %50 = math.rsqrt %49 : vector<1x128xf32>
    %51 = arith.mulf %47, %50 : vector<1x128xf32>
    %c1 = arith.constant 1 : index
    %c0_18 = arith.constant 0 : index
    %52 = vector.load %arg3[%c1, %c0_18] : memref<2x128xf32, #tpu.memory_space<vmem>>, vector<1x128xf32>
    %53 = vector.broadcast %51 : vector<1x128xf32> to vector<16x128xf32>
    %54 = arith.mulf %31, %53 : vector<16x128xf32>
    %55 = vector.broadcast %52 : vector<1x128xf32> to vector<16x128xf32>
    %56 = arith.addf %54, %55 : vector<16x128xf32>
    %cst_19 = arith.constant 0.000000e+00 : f32
    %57 = vector.broadcast %cst_19 : f32 to vector<16x128xf32>
    %58 = arith.maximumf %56, %57 : vector<16x128xf32>
    %59 = tpu.iota {dimensions = array<i32: 0>} : vector<16x128xi32>
    %c0_i32_20 = arith.constant 0 : i32
    %60 = vector.broadcast %c0_i32_20 : i32 to vector<16x128xi32>
    %61 = arith.cmpi eq, %59, %60 : vector<16x128xi32>
    %c1_i32_21 = arith.constant 1 : i32
    %62 = tpu.dynamic_rotate %58 by %c1_i32_21 dim 0 : vector<16x128xf32>, i32 -> vector<16x128xf32>
    %cst_22 = arith.constant 0.000000e+00 : f32
    %63 = vector.broadcast %cst_22 : f32 to vector<16x128xf32>
    %64 = arith.select %61, %63, %62 : vector<16x128xi1>, vector<16x128xf32>
    %c15_i32_23 = arith.constant 15 : i32
    %65 = vector.broadcast %c15_i32_23 : i32 to vector<16x128xi32>
    %66 = arith.cmpi eq, %59, %65 : vector<16x128xi32>
    %c15_i32_24 = arith.constant 15 : i32
    %67 = tpu.dynamic_rotate %58 by %c15_i32_24 dim 0 : vector<16x128xf32>, i32 -> vector<16x128xf32>
    %cst_25 = arith.constant 0.000000e+00 : f32
    %68 = vector.broadcast %cst_25 : f32 to vector<16x128xf32>
    %69 = arith.select %66, %68, %67 : vector<16x128xi1>, vector<16x128xf32>
    %70 = tpu.concatenate %64, %58, %69 in 1 : vector<16x128xf32>, vector<16x128xf32>, vector<16x128xf32> -> vector<16x384xf32>
    %71 = arith.truncf %70 : vector<16x384xf32> to vector<16x384xbf16>
    %c0_26 = arith.constant 0 : index
    %c0_27 = arith.constant 0 : index
    %72 = vector.load %arg2[%c0_26, %c0_27] : memref<384x128xbf16, #tpu.memory_space<vmem>>, vector<384x128xbf16>
    %cst_28 = arith.constant dense<0.000000e+00> : vector<16x128xf32>
    %73 = tpu.matmul %71, %72, %cst_28 {dimension_numbers = #tpu.dot_dimension_numbers<[1], [0], [0], [1], [0, 0, 1, 1], [], []>} : vector<16x384xbf16>, vector<384x128xbf16>, vector<16x128xf32> -> vector<16x128xf32>
    %cst_29 = arith.constant dense<0.000000e+00> : vector<128xf32>
    %74 = vector.multi_reduction <add>, %73, %cst_29 [0] : vector<16x128xf32> to vector<128xf32>
    %75 = vector.shape_cast %74 : vector<128xf32> to vector<1x128xf32>
    %c4_i32_30 = arith.constant 4 : i32
    %76 = tpu.dynamic_rotate %75 by %c4_i32_30 dim 1 : vector<1x128xf32>, i32 -> vector<1x128xf32>
    %77 = arith.addf %75, %76 : vector<1x128xf32>
    %c8_i32_31 = arith.constant 8 : i32
    %78 = tpu.dynamic_rotate %77 by %c8_i32_31 dim 1 : vector<1x128xf32>, i32 -> vector<1x128xf32>
    %79 = arith.addf %77, %78 : vector<1x128xf32>
    %c16_i32_32 = arith.constant 16 : i32
    %80 = tpu.dynamic_rotate %79 by %c16_i32_32 dim 1 : vector<1x128xf32>, i32 -> vector<1x128xf32>
    %81 = arith.addf %79, %80 : vector<1x128xf32>
    %c32_i32_33 = arith.constant 32 : i32
    %82 = tpu.dynamic_rotate %81 by %c32_i32_33 dim 1 : vector<1x128xf32>, i32 -> vector<1x128xf32>
    %83 = arith.addf %81, %82 : vector<1x128xf32>
    %c64_i32_34 = arith.constant 64 : i32
    %84 = tpu.dynamic_rotate %83 by %c64_i32_34 dim 1 : vector<1x128xf32>, i32 -> vector<1x128xf32>
    %85 = arith.addf %83, %84 : vector<1x128xf32>
    %cst_35 = arith.constant 0.001953125 : f32
    %86 = vector.broadcast %cst_35 : f32 to vector<1x128xf32>
    %87 = arith.mulf %85, %86 : vector<1x128xf32>
    %88 = vector.broadcast %87 : vector<1x128xf32> to vector<16x128xf32>
    %89 = arith.subf %73, %88 : vector<16x128xf32>
    %90 = arith.mulf %89, %89 : vector<16x128xf32>
    %cst_36 = arith.constant dense<0.000000e+00> : vector<128xf32>
    %91 = vector.multi_reduction <add>, %90, %cst_36 [0] : vector<16x128xf32> to vector<128xf32>
    %92 = vector.shape_cast %91 : vector<128xf32> to vector<1x128xf32>
    %c4_i32_37 = arith.constant 4 : i32
    %93 = tpu.dynamic_rotate %92 by %c4_i32_37 dim 1 : vector<1x128xf32>, i32 -> vector<1x128xf32>
    %94 = arith.addf %92, %93 : vector<1x128xf32>
    %c8_i32_38 = arith.constant 8 : i32
    %95 = tpu.dynamic_rotate %94 by %c8_i32_38 dim 1 : vector<1x128xf32>, i32 -> vector<1x128xf32>
    %96 = arith.addf %94, %95 : vector<1x128xf32>
    %c16_i32_39 = arith.constant 16 : i32
    %97 = tpu.dynamic_rotate %96 by %c16_i32_39 dim 1 : vector<1x128xf32>, i32 -> vector<1x128xf32>
    %98 = arith.addf %96, %97 : vector<1x128xf32>
    %c32_i32_40 = arith.constant 32 : i32
    %99 = tpu.dynamic_rotate %98 by %c32_i32_40 dim 1 : vector<1x128xf32>, i32 -> vector<1x128xf32>
    %100 = arith.addf %98, %99 : vector<1x128xf32>
    %c64_i32_41 = arith.constant 64 : i32
    %101 = tpu.dynamic_rotate %100 by %c64_i32_41 dim 1 : vector<1x128xf32>, i32 -> vector<1x128xf32>
    %102 = arith.addf %100, %101 : vector<1x128xf32>
    %cst_42 = arith.constant 0.001953125 : f32
    %103 = vector.broadcast %cst_42 : f32 to vector<1x128xf32>
    %104 = arith.mulf %102, %103 : vector<1x128xf32>
    %c0_43 = arith.constant 0 : index
    %c0_44 = arith.constant 0 : index
    %105 = vector.load %arg4[%c0_43, %c0_44] : memref<2x128xf32, #tpu.memory_space<vmem>>, vector<1x128xf32>
    %cst_45 = arith.constant 9.99999974E-6 : f32
    %106 = vector.broadcast %cst_45 : f32 to vector<1x128xf32>
    %107 = arith.addf %104, %106 : vector<1x128xf32>
    %108 = math.rsqrt %107 : vector<1x128xf32>
    %109 = arith.mulf %105, %108 : vector<1x128xf32>
    %c1_46 = arith.constant 1 : index
    %c0_47 = arith.constant 0 : index
    %110 = vector.load %arg4[%c1_46, %c0_47] : memref<2x128xf32, #tpu.memory_space<vmem>>, vector<1x128xf32>
    %111 = vector.broadcast %109 : vector<1x128xf32> to vector<16x128xf32>
    %112 = arith.mulf %89, %111 : vector<16x128xf32>
    %113 = vector.broadcast %110 : vector<1x128xf32> to vector<16x128xf32>
    %114 = arith.addf %112, %113 : vector<16x128xf32>
    %115 = arith.addf %114, %0 : vector<16x128xf32>
    %cst_48 = arith.constant 0.000000e+00 : f32
    %116 = vector.broadcast %cst_48 : f32 to vector<16x128xf32>
    %117 = arith.maximumf %115, %116 : vector<16x128xf32>
    %c0_49 = arith.constant 0 : index
    %c0_50 = arith.constant 0 : index
    %118 = vector.load %arg5[%c0_49, %c0_50] : memref<16x128xf32, #tpu.memory_space<vmem>>, vector<16x128xf32>
    tpu.vector_store %arg5[%c0_49, %c0_50], %117 {strides = array<i32>} : memref<16x128xf32, #tpu.memory_space<vmem>>, vector<16x128xf32>,
    return
  }
}

</mosaic_0001>

<llo_original>
// kernel: tpu_custom_call.1
$region0: #{tpu_custom_call.1}
  #allocation0 [shape = 'u32[]', space=smem, size = 0x4, offset = 0x4, fixed_abs, tag = 'smem constant byte address 0x4 - core index']
  #allocation1 [shape = 'u32[72,128]{1,0:T(1,128)}', space=vmem, size = 0x9000, scoped, tag = 'internal scratch']
  %s0 = inlined_call_operand.hbm [shape: f32[16,128], index: 0, kind: input, shape index: {}]
  %s1 = inlined_call_operand.hbm [shape: bf16[384,128], index: 1, kind: input, shape index: {}]
  %s2 = inlined_call_operand.hbm [shape: bf16[384,128], index: 2, kind: input, shape index: {}]
  %s3 = inlined_call_operand.vmem [shape: f32[2,128], index: 3, kind: input, shape index: {}]
  %s4 = inlined_call_operand.hbm [shape: f32[2,128], index: 4, kind: input, shape index: {}]
  %s5 = inlined_call_operand.hbm [shape: f32[16,128], index: 5, kind: output, shape index: {}]
  %s6 = sld [smem:[#allocation0]]
  $region46: #{tpu_custom_call.1} parent=0
    _
  %s8 = ssub.s32 1, %s6
  %s9 = scalar_select 0, %s8, %s6
  $region1: #{tpu_custom_call.1} parent=0
    #allocation2 [shape = 'u8[8192]{0}', space=vmem, size = 0x2000, scoped, tag = 'input window, operand 0, single buffered']
    #allocation3 [shape = 's32[1]{0}', space=sflag, size = 0x4, scoped, tag = 'scoped memory for tpu_custom_call.1']
    #allocation4 [shape = 's32[1]{0}', space=sflag, size = 0x4, scoped, tag = 'scoped memory for tpu_custom_call.1']
    #allocation5 [shape = 'u8[98304]{0}', space=vmem, size = 0x18000, scoped, tag = 'input window, operand 1, single buffered']
    #allocation6 [shape = 's32[1]{0}', space=sflag, size = 0x4, scoped, tag = 'scoped memory for tpu_custom_call.1']
    #allocation7 [shape = 'u8[98304]{0}', space=vmem, size = 0x18000, scoped, tag = 'input window, operand 2, single buffered']
    #allocation8 [shape = 'u8[1024]{0}', space=vmem, size = 0x400, scoped, tag = 'input window, operand 4, single buffered']
    #allocation9 [shape = 's32[1]{0}', space=sflag, size = 0x4, scoped, tag = 'scoped memory for tpu_custom_call.1']
    #allocation10 [shape = 'u8[8192]{0}', space=vmem, size = 0x2000, scoped, tag = 'output window, operand 0, single buffered']
    %10 = vsyncpa [#allocation3], 0
    %11 = vsyncpa [#allocation6], 0
    %12 = vsyncpa [#allocation9], 0
    %13 = vsyncpa [#allocation4], 0
    // Predicated region
    $region2: #{tpu_custom_call.1} parent=1 // pred_check
      _
    $region3: #{tpu_custom_call.1} parent=1 // pred_check_branch
      %15 = sbr.rel (0) target = $region5
    $region4: #{tpu_custom_call.1} parent=1 // pred_region
      %17 = vsyncadd [#allocation3], 0
      %s18 = sshll.u32 %s0, 4
      %s19 = int_to_ptr.hbm [resolvable:$true] %s18
      %s20 = sshll.u32 [#allocation2], 4
      %s21 = int_to_ptr.vmem [resolvable:$true] %s20
      %26 = dma.hbm_to_vmem [thread:$0]  %s19, 256, %s21, [#allocation3], 128, 128, 8
    $region5: #{tpu_custom_call.1} parent=1 // pred_fallthru
      _
    // Predicated region
    $region6: #{tpu_custom_call.1} parent=1 // pred_check
      _
    $region7: #{tpu_custom_call.1} parent=1 // pred_check_branch
      %28 = sbr.rel (0) target = $region9
    $region8: #{tpu_custom_call.1} parent=1 // pred_region
      %30 = vsyncadd [#allocation6], 0
      %s31 = sshll.u32 %s1, 4
      %s32 = int_to_ptr.hbm [resolvable:$true] %s31
      %s33 = sshll.u32 [#allocation5], 4
      %s34 = int_to_ptr.vmem [resolvable:$true] %s33
      %39 = dma.hbm_to_vmem [thread:$0]  %s32, 3072, %s34, [#allocation6], 64, 64, 4
    $region9: #{tpu_custom_call.1} parent=1 // pred_fallthru
      _
    // Predicated region
    $region10: #{tpu_custom_call.1} parent=1 // pred_check
      _
    $region11: #{tpu_custom_call.1} parent=1 // pred_check_branch
      %41 = sbr.rel (0) target = $region13
    $region12: #{tpu_custom_call.1} parent=1 // pred_region
      %43 = vsyncadd [#allocation6], 0
      %s44 = sshll.u32 %s2, 4
      %s45 = int_to_ptr.hbm [resolvable:$true] %s44
      %s46 = sshll.u32 [#allocation7], 4
      %s47 = int_to_ptr.vmem [resolvable:$true] %s46
      %52 = dma.hbm_to_vmem [thread:$0]  %s45, 3072, %s47, [#allocation6], 64, 64, 4
    $region13: #{tpu_custom_call.1} parent=1 // pred_fallthru
      _
    // Predicated region
    $region14: #{tpu_custom_call.1} parent=1 // pred_check
      _
    $region15: #{tpu_custom_call.1} parent=1 // pred_check_branch
      %54 = sbr.rel (0) target = $region17
    $region16: #{tpu_custom_call.1} parent=1 // pred_region
      _
    $region17: #{tpu_custom_call.1} parent=1 // pred_fallthru
      _
    // Predicated region
    $region18: #{tpu_custom_call.1} parent=1 // pred_check
      _
    $region19: #{tpu_custom_call.1} parent=1 // pred_check_branch
      %56 = sbr.rel (0) target = $region21
    $region20: #{tpu_custom_call.1} parent=1 // pred_region
      %58 = vsyncadd [#allocation9], 0
      %s60 = sshll.u32 %s4, 4
      %s61 = int_to_ptr.hbm [resolvable:$true] %s60
      %s62 = sshll.u32 [#allocation8], 4
      %s63 = int_to_ptr.vmem [resolvable:$true] %s62
      %65 = dma.hbm_to_vmem [thread:$0]  %s61, 32, %s63, [#allocation9]
    $region21: #{tpu_custom_call.1} parent=1 // pred_fallthru
      _
    // Predicated region
    $region22: #{tpu_custom_call.1} parent=1 // pred_check
      _
    $region23: #{tpu_custom_call.1} parent=1 // pred_check_branch
      %67 = sbr.rel (0) target = $region25
    $region24: #{tpu_custom_call.1} parent=1 // pred_region
      %69 = dma.done [#allocation3], 256
    $region25: #{tpu_custom_call.1} parent=1 // pred_fallthru
      _
    // Predicated region
    $region26: #{tpu_custom_call.1} parent=1 // pred_check
      _
    $region27: #{tpu_custom_call.1} parent=1 // pred_check_branch
      %71 = sbr.rel (0) target = $region29
    $region28: #{tpu_custom_call.1} parent=1 // pred_region
      %73 = dma.done [#allocation6], 3072
    $region29: #{tpu_custom_call.1} parent=1 // pred_fallthru
      _
    // Predicated region
    $region30: #{tpu_custom_call.1} parent=1 // pred_check
      _
    $region31: #{tpu_custom_call.1} parent=1 // pred_check_branch
      %75 = sbr.rel (0) target = $region33
    $region32: #{tpu_custom_call.1} parent=1 // pred_region
      %77 = dma.done [#allocation6], 3072
    $region33: #{tpu_custom_call.1} parent=1 // pred_fallthru
      _
    // Predicated region
    $region34: #{tpu_custom_call.1} parent=1 // pred_check
      _
    $region35: #{tpu_custom_call.1} parent=1 // pred_check_branch
      %79 = sbr.rel (0) target = $region37
    $region36: #{tpu_custom_call.1} parent=1 // pred_region
      %81 = dma.done [#allocation9], 32
    $region37: #{tpu_custom_call.1} parent=1 // pred_fallthru
      _
    %v82 = vld [vmem:[#allocation2] sm:$0xff]
    %v83 = vld [vmem:[#allocation2 + $0x8] sm:$0xff]
    %v84 = vlaneseq
    %v85 = vshrl.u32 %v84, 7
    %v86 = vadd.s32 %v85, 8
    %vm87 = vcmp.eq.s32.totalorder %v85, 0
    %vm88 = vcmp.eq.s32.totalorder %v86, 0
    %v89 = vrot.slane %v82, 7
    %v90 = vrot.slane %v83, 7
    %vm91 = vcmp.lt.s32.totalorder %v85, 1
    %v92 = vsel %vm91, %v89, %v90
    %v93 = vsel %vm91, %v90, %v89
    %v94 = vsel %vm87, 0.0, %v93
    %v95 = vsel %vm88, 0.0, %v92
    %vm96 = vcmp.eq.s32.totalorder %v85, 15
    %vm97 = vcmp.eq.s32.totalorder %v86, 15
    %v98 = vrot.slane %v82, 1
    %v99 = vrot.slane %v83, 1
    %vm100 = vcmp.lt.s32.totalorder %v85, 7
    %v101 = vsel %vm100, %v98, %v99
    %v102 = vsel %vm100, %v99, %v98
    %v103 = vsel %vm96, 0.0, %v101
    %v104 = vsel %vm97, 0.0, %v102
    %v105 = vpack.c.bf16 %v95, %v94
    %v106 = vpack.c.bf16 %v83, %v82
    %v107 = vpack.c.bf16 %v104, %v103
    %v108 = vld [vmem:[#allocation5] sm:$0xf]
    %v109 = vld [vmem:[#allocation5 + $0x4] sm:$0xf]
    %v110 = vld [vmem:[#allocation5 + $0x8] sm:$0xf]
    %v111 = vld [vmem:[#allocation5 + $0xc] sm:$0xf]
    %v112 = vld [vmem:[#allocation5 + $0x10] sm:$0xf]
    %v113 = vld [vmem:[#allocation5 + $0x14] sm:$0xf]
    %v114 = vld [vmem:[#allocation5 + $0x18] sm:$0xf]
    %v115 = vld [vmem:[#allocation5 + $0x1c] sm:$0xf]
    %v116 = vld [vmem:[#allocation5 + $0x20] sm:$0xf]
    %v117 = vld [vmem:[#allocation5 + $0x24] sm:$0xf]
    %v118 = vld [vmem:[#allocation5 + $0x28] sm:$0xf]
    %v119 = vld [vmem:[#allocation5 + $0x2c] sm:$0xf]
    %v120 = vld [vmem:[#allocation5 + $0x30] sm:$0xf]
    %v121 = vld [vmem:[#allocation5 + $0x34] sm:$0xf]
    %v122 = vld [vmem:[#allocation5 + $0x38] sm:$0xf]
    %v123 = vld [vmem:[#allocation5 + $0x3c] sm:$0xf]
    %v124 = vld [vmem:[#allocation5 + $0x40] sm:$0xf]
    %v125 = vld [vmem:[#allocation5 + $0x44] sm:$0xf]
    %v126 = vld [vmem:[#allocation5 + $0x48] sm:$0xf]
    %v127 = vld [vmem:[#allocation5 + $0x4c] sm:$0xf]
    %v128 = vld [vmem:[#allocation5 + $0x50] sm:$0xf]
    %v129 = vld [vmem:[#allocation5 + $0x54] sm:$0xf]
    %v130 = vld [vmem:[#allocation5 + $0x58] sm:$0xf]
    %v131 = vld [vmem:[#allocation5 + $0x5c] sm:$0xf]
    %v132 = vld [vmem:[#allocation5 + $0x60] sm:$0xf]
    %v133 = vld [vmem:[#allocation5 + $0x64] sm:$0xf]
    %v134 = vld [vmem:[#allocation5 + $0x68] sm:$0xf]
    %v135 = vld [vmem:[#allocation5 + $0x6c] sm:$0xf]
    %v136 = vld [vmem:[#allocation5 + $0x70] sm:$0xf]
    %v137 = vld [vmem:[#allocation5 + $0x74] sm:$0xf]
    %v138 = vld [vmem:[#allocation5 + $0x78] sm:$0xf]
    %v139 = vld [vmem:[#allocation5 + $0x7c] sm:$0xf]
    %v140 = vld [vmem:[#allocation5 + $0x80] sm:$0xf]
    %v141 = vld [vmem:[#allocation5 + $0x84] sm:$0xf]
    %v142 = vld [vmem:[#allocation5 + $0x88] sm:$0xf]
    %v143 = vld [vmem:[#allocation5 + $0x8c] sm:$0xf]
    %v144 = vld [vmem:[#allocation5 + $0x90] sm:$0xf]
    %v145 = vld [vmem:[#allocation5 + $0x94] sm:$0xf]
    %v146 = vld [vmem:[#allocation5 + $0x98] sm:$0xf]
    %v147 = vld [vmem:[#allocation5 + $0x9c] sm:$0xf]
    %v148 = vld [vmem:[#allocation5 + $0xa0] sm:$0xf]
    %v149 = vld [vmem:[#allocation5 + $0xa4] sm:$0xf]
    %v150 = vld [vmem:[#allocation5 + $0xa8] sm:$0xf]
    %v151 = vld [vmem:[#allocation5 + $0xac] sm:$0xf]
    %v152 = vld [vmem:[#allocation5 + $0xb0] sm:$0xf]
    %v153 = vld [vmem:[#allocation5 + $0xb4] sm:$0xf]
    %v154 = vld [vmem:[#allocation5 + $0xb8] sm:$0xf]
    %v155 = vld [vmem:[#allocation5 + $0xbc] sm:$0xf]
    %v204 = vunpack.c.l.b16 %v108
    %v205 = vunpack.c.l.b16 %v109
    %v206 = vunpack.c.l.b16 %v110
    %v207 = vunpack.c.l.b16 %v111
    %v208 = vunpack.c.l.b16 %v112
    %v209 = vunpack.c.l.b16 %v113
    %v210 = vunpack.c.l.b16 %v114
    %v211 = vunpack.c.l.b16 %v115
    %v212 = vunpack.c.l.b16 %v116
    %v213 = vunpack.c.l.b16 %v117
    %v214 = vunpack.c.l.b16 %v118
    %v215 = vunpack.c.l.b16 %v119
    %v216 = vunpack.c.l.b16 %v120
    %v217 = vunpack.c.l.b16 %v121
    %v218 = vunpack.c.l.b16 %v122
    %v219 = vunpack.c.l.b16 %v123
    %v220 = vunpack.c.l.b16 %v124
    %v221 = vunpack.c.l.b16 %v125
    %v222 = vunpack.c.l.b16 %v126
    %v223 = vunpack.c.l.b16 %v127
    %v224 = vunpack.c.l.b16 %v128
    %v225 = vunpack.c.l.b16 %v129
    %v226 = vunpack.c.l.b16 %v130
    %v227 = vunpack.c.l.b16 %v131
    %v228 = vunpack.c.l.b16 %v132
    %v229 = vunpack.c.l.b16 %v133
    %v230 = vunpack.c.l.b16 %v134
    %v231 = vunpack.c.l.b16 %v135
    %v232 = vunpack.c.l.b16 %v136
    %v233 = vunpack.c.l.b16 %v137
    %v234 = vunpack.c.l.b16 %v138
    %v235 = vunpack.c.l.b16 %v139
    %v236 = vunpack.c.l.b16 %v140
    %v237 = vunpack.c.l.b16 %v141
    %v238 = vunpack.c.l.b16 %v142
    %v239 = vunpack.c.l.b16 %v143
    %v240 = vunpack.c.l.b16 %v144
    %v241 = vunpack.c.l.b16 %v145
    %v242 = vunpack.c.l.b16 %v146
    %v243 = vunpack.c.l.b16 %v147
    %v244 = vunpack.c.l.b16 %v148
    %v245 = vunpack.c.l.b16 %v149
    %v246 = vunpack.c.l.b16 %v150
    %v247 = vunpack.c.l.b16 %v151
    %v248 = vunpack.c.l.b16 %v152
    %v249 = vunpack.c.l.b16 %v153
    %v250 = vunpack.c.l.b16 %v154
    %v251 = vunpack.c.l.b16 %v155
    %v252 = vpack.c.b16 %v205, %v204
    %v253 = vpack.c.b16 %v207, %v206
    %v254 = vpack.c.b16 %v209, %v208
    %v255 = vpack.c.b16 %v211, %v210
    %v256 = vpack.c.b16 %v213, %v212
    %v257 = vpack.c.b16 %v215, %v214
    %v258 = vpack.c.b16 %v217, %v216
    %v259 = vpack.c.b16 %v219, %v218
    %v260 = vpack.c.b16 %v221, %v220
    %v261 = vpack.c.b16 %v223, %v222
    %v262 = vpack.c.b16 %v225, %v224
    %v263 = vpack.c.b16 %v227, %v226
    %v264 = vpack.c.b16 %v229, %v228
    %v265 = vpack.c.b16 %v231, %v230
    %v266 = vpack.c.b16 %v233, %v232
    %v267 = vpack.c.b16 %v235, %v234
    %v268 = vpack.c.b16 %v237, %v236
    %v269 = vpack.c.b16 %v239, %v238
    %v270 = vpack.c.b16 %v241, %v240
    %v271 = vpack.c.b16 %v243, %v242
    %v272 = vpack.c.b16 %v245, %v244
    %v273 = vpack.c.b16 %v247, %v246
    %v274 = vpack.c.b16 %v249, %v248
    %v275 = vpack.c.b16 %v251, %v250
    %300 = vmatpush.bf16.msra.mxu0 %v259
    %301 = vmatpush.bf16.msra.mxu0 %v258
    %302 = vmatpush.bf16.msra.mxu0 %v257
    %303 = vmatpush.bf16.msra.mxu0 %v256
    %304 = vmatpush.bf16.msra.mxu0 %v255
    %305 = vmatpush.bf16.msra.mxu0 %v254
    %306 = vmatpush.bf16.msra.mxu0 %v253
    %307 = vmatpush.bf16.msra.mxu0 %v252
    %308 = vmatmul.bf16.gmra.mxu0 %v105
    %v309 = vpop.f32.mrf.mxu0
    %v310 = vadd.f32 0.0, %v309
    %v311 = vpop.f32.mrf.mxu0
    %v312 = vadd.f32 0.0, %v311
    %313 = vdwg.mxu0
    %314 = vmatpush.bf16.msra.mxu0 %v267
    %315 = vmatpush.bf16.msra.mxu0 %v266
    %316 = vmatpush.bf16.msra.mxu0 %v265
    %317 = vmatpush.bf16.msra.mxu0 %v264
    %318 = vmatpush.bf16.msra.mxu0 %v263
    %319 = vmatpush.bf16.msra.mxu0 %v262
    %320 = vmatpush.bf16.msra.mxu0 %v261
    %321 = vmatpush.bf16.msra.mxu0 %v260
    %322 = vmatmul.bf16.gmra.mxu0 %v106
    %v323 = vpop.f32.mrf.mxu0
    %v324 = vadd.f32 %v310, %v323
    %v325 = vpop.f32.mrf.mxu0
    %v326 = vadd.f32 %v312, %v325
    %327 = vdwg.mxu0
    %328 = vmatpush.bf16.msra.mxu0 %v275
    %329 = vmatpush.bf16.msra.mxu0 %v274
    %330 = vmatpush.bf16.msra.mxu0 %v273
    %331 = vmatpush.bf16.msra.mxu0 %v272
    %332 = vmatpush.bf16.msra.mxu0 %v271
    %333 = vmatpush.bf16.msra.mxu0 %v270
    %334 = vmatpush.bf16.msra.mxu0 %v269
    %335 = vmatpush.bf16.msra.mxu0 %v268
    %336 = vmatmul.bf16.gmra.mxu0 %v107
    %v337 = vpop.f32.mrf.mxu0
    %v338 = vadd.f32 %v324, %v337
    %v339 = vpop.f32.mrf.mxu0
    %v340 = vadd.f32 %v326, %v339
    %341 = vdwg.mxu0
    %v342 = vadd.f32 %v338, %v340
    %v343 = vrot.slane %v342, 4
    %v344 = vadd.f32 %v342, %v343
    %v345 = vrot.slane %v344, 2
    %v346 = vadd.f32 %v344, %v345
    %v347 = vrot.slane %v346, 1
    %v348 = vadd.f32 %v346, %v347
    %349 = vrot.lane.b32.xlu0 %v348, 4
    %v350 = vpop.permute.xlu0 %349
    %v351 = vadd.f32 %v348, %v350
    %352 = vrot.lane.b32.xlu0 %v351, 8
    %v353 = vpop.permute.xlu0 %352
    %v354 = vadd.f32 %v351, %v353
    %355 = vrot.lane.b32.xlu0 %v354, 16
    %v356 = vpop.permute.xlu0 %355
    %v357 = vadd.f32 %v354, %v356
    %358 = vrot.lane.b32.xlu0 %v357, 32
    %v359 = vpop.permute.xlu0 %358
    %v360 = vadd.f32 %v357, %v359
    %361 = vrot.lane.b32.xlu0 %v360, 64
    %v362 = vpop.permute.xlu0 %361
    %v363 = vadd.f32 %v360, %v362
    %v364 = vmul.f32 %v363, 0.001953125
    %v365 = vperm.slane %v364, 0
    %v366 = vsub.f32 %v338, %v365
    %v367 = vsub.f32 %v340, %v365
    %v368 = vmul.f32 %v366, %v366
    %v369 = vmul.f32 %v367, %v367
    %v370 = vadd.f32 %v368, %v369
    %v371 = vrot.slane %v370, 4
    %v372 = vadd.f32 %v370, %v371
    %v373 = vrot.slane %v372, 2
    %v374 = vadd.f32 %v372, %v373
    %v375 = vrot.slane %v374, 1
    %v376 = vadd.f32 %v374, %v375
    %377 = vrot.lane.b32.xlu0 %v376, 4
    %v378 = vpop.permute.xlu0 %377
    %v379 = vadd.f32 %v376, %v378
    %380 = vrot.lane.b32.xlu0 %v379, 8
    %v381 = vpop.permute.xlu0 %380
    %v382 = vadd.f32 %v379, %v381
    %383 = vrot.lane.b32.xlu0 %v382, 16
    %v384 = vpop.permute.xlu0 %383
    %v385 = vadd.f32 %v382, %v384
    %386 = vrot.lane.b32.xlu0 %v385, 32
    %v387 = vpop.permute.xlu0 %386
    %v388 = vadd.f32 %v385, %v387
    %389 = vrot.lane.b32.xlu0 %v388, 64
    %v390 = vpop.permute.xlu0 %389
    %v391 = vadd.f32 %v388, %v390
    %v392 = vmul.f32 %v391, 0.001953125
    %v393 = vld [vmem:[%s3] sm:$0x1]
    %v394 = vadd.f32 %v392, 1e-05
    %v395 = vrsqrt.pop %v394
    %v396 = vmul.f32 %v395, %v394
    %v397 = vmul.f32 %v396, %v395
    %v398 = vmul.f32 0.5, %v397
    %v399 = vsub.f32 1.5, %v398
    %v400 = vmul.f32 %v395, %v399
    %vm401 = vweird.f32 %v394
    %vm402 = vweird.f32 %v395
    %vm403 = vmor %vm401, %vm402
    %v404 = vsel %vm403, %v395, %v400
    %v405 = vmul.f32 %v393, %v404
    %v406 = vld [vmem:[%s3 + $0x1] sm:$0x1]
    %v407 = vperm.slane %v405, 0
    %v408 = vmul.f32 %v366, %v407
    %v409 = vmul.f32 %v367, %v407
    %v410 = vperm.slane %v406, 0
    %v411 = vadd.f32 %v408, %v410
    %v412 = vadd.f32 %v409, %v410
    %v413 = vmax.f32 %v411, 0.0
    %v414 = vmax.f32 %v412, 0.0
    %v415 = vrot.slane %v413, 7
    %v416 = vrot.slane %v414, 7
    %v417 = vsel %vm91, %v415, %v416
    %v418 = vsel %vm91, %v416, %v415
    %v419 = vsel %vm87, 0.0, %v418
    %v420 = vsel %vm88, 0.0, %v417
    %v421 = vrot.slane %v413, 1
    %v422 = vrot.slane %v414, 1
    %v423 = vsel %vm100, %v421, %v422
    %v424 = vsel %vm100, %v422, %v421
    %v425 = vsel %vm96, 0.0, %v423
    %v426 = vsel %vm97, 0.0, %v424
    %v427 = vpack.c.bf16 %v420, %v419
    %v428 = vpack.c.bf16 %v414, %v413
    %v429 = vpack.c.bf16 %v426, %v425
    %v430 = vld [vmem:[#allocation7] sm:$0xf]
    %v431 = vld [vmem:[#allocation7 + $0x4] sm:$0xf]
    %v432 = vld [vmem:[#allocation7 + $0x8] sm:$0xf]
    %v433 = vld [vmem:[#allocation7 + $0xc] sm:$0xf]
    %v434 = vld [vmem:[#allocation7 + $0x10] sm:$0xf]
    %v435 = vld [vmem:[#allocation7 + $0x14] sm:$0xf]
    %v436 = vld [vmem:[#allocation7 + $0x18] sm:$0xf]
    %v437 = vld [vmem:[#allocation7 + $0x1c] sm:$0xf]
    %v438 = vld [vmem:[#allocation7 + $0x20] sm:$0xf]
    %v439 = vld [vmem:[#allocation7 + $0x24] sm:$0xf]
    %v440 = vld [vmem:[#allocation7 + $0x28] sm:$0xf]
    %v441 = vld [vmem:[#allocation7 + $0x2c] sm:$0xf]
    %v442 = vld [vmem:[#allocation7 + $0x30] sm:$0xf]
    %v443 = vld [vmem:[#allocation7 + $0x34] sm:$0xf]
    %v444 = vld [vmem:[#allocation7 + $0x38] sm:$0xf]
    %v445 = vld [vmem:[#allocation7 + $0x3c] sm:$0xf]
    %v446 = vld [vmem:[#allocation7 + $0x40] sm:$0xf]
    %v447 = vld [vmem:[#allocation7 + $0x44] sm:$0xf]
    %v448 = vld [vmem:[#allocation7 + $0x48] sm:$0xf]
    %v449 = vld [vmem:[#allocation7 + $0x4c] sm:$0xf]
    %v450 = vld [vmem:[#allocation7 + $0x50] sm:$0xf]
    %v451 = vld [vmem:[#allocation7 + $0x54] sm:$0xf]
    %v452 = vld [vmem:[#allocation7 + $0x58] sm:$0xf]
    %v453 = vld [vmem:[#allocation7 + $0x5c] sm:$0xf]
    %v454 = vld [vmem:[#allocation7 + $0x60] sm:$0xf]
    %v455 = vld [vmem:[#allocation7 + $0x64] sm:$0xf]
    %v456 = vld [vmem:[#allocation7 + $0x68] sm:$0xf]
    %v457 = vld [vmem:[#allocation7 + $0x6c] sm:$0xf]
    %v458 = vld [vmem:[#allocation7 + $0x70] sm:$0xf]
    %v459 = vld [vmem:[#allocation7 + $0x74] sm:$0xf]
    %v460 = vld [vmem:[#allocation7 + $0x78] sm:$0xf]
    %v461 = vld [vmem:[#allocation7 + $0x7c] sm:$0xf]
    %v462 = vld [vmem:[#allocation7 + $0x80] sm:$0xf]
    %v463 = vld [vmem:[#allocation7 + $0x84] sm:$0xf]
    %v464 = vld [vmem:[#allocation7 + $0x88] sm:$0xf]
    %v465 = vld [vmem:[#allocation7 + $0x8c] sm:$0xf]
    %v466 = vld [vmem:[#allocation7 + $0x90] sm:$0xf]
    %v467 = vld [vmem:[#allocation7 + $0x94] sm:$0xf]
    %v468 = vld [vmem:[#allocation7 + $0x98] sm:$0xf]
    %v469 = vld [vmem:[#allocation7 + $0x9c] sm:$0xf]
    %v470 = vld [vmem:[#allocation7 + $0xa0] sm:$0xf]
    %v471 = vld [vmem:[#allocation7 + $0xa4] sm:$0xf]
    %v472 = vld [vmem:[#allocation7 + $0xa8] sm:$0xf]
    %v473 = vld [vmem:[#allocation7 + $0xac] sm:$0xf]
    %v474 = vld [vmem:[#allocation7 + $0xb0] sm:$0xf]
    %v475 = vld [vmem:[#allocation7 + $0xb4] sm:$0xf]
    %v476 = vld [vmem:[#allocation7 + $0xb8] sm:$0xf]
    %v477 = vld [vmem:[#allocation7 + $0xbc] sm:$0xf]
    %v526 = vunpack.c.l.b16 %v430
    %v527 = vunpack.c.l.b16 %v431
    %v528 = vunpack.c.l.b16 %v432
    %v529 = vunpack.c.l.b16 %v433
    %v530 = vunpack.c.l.b16 %v434
    %v531 = vunpack.c.l.b16 %v435
    %v532 = vunpack.c.l.b16 %v436
    %v533 = vunpack.c.l.b16 %v437
    %v534 = vunpack.c.l.b16 %v438
    %v535 = vunpack.c.l.b16 %v439
    %v536 = vunpack.c.l.b16 %v440
    %v537 = vunpack.c.l.b16 %v441
    %v538 = vunpack.c.l.b16 %v442
    %v539 = vunpack.c.l.b16 %v443
    %v540 = vunpack.c.l.b16 %v444
    %v541 = vunpack.c.l.b16 %v445
    %v542 = vunpack.c.l.b16 %v446
    %v543 = vunpack.c.l.b16 %v447
    %v544 = vunpack.c.l.b16 %v448
    %v545 = vunpack.c.l.b16 %v449
    %v546 = vunpack.c.l.b16 %v450
    %v547 = vunpack.c.l.b16 %v451
    %v548 = vunpack.c.l.b16 %v452
    %v549 = vunpack.c.l.b16 %v453
    %v550 = vunpack.c.l.b16 %v454
    %v551 = vunpack.c.l.b16 %v455
    %v552 = vunpack.c.l.b16 %v456
    %v553 = vunpack.c.l.b16 %v457
    %v554 = vunpack.c.l.b16 %v458
    %v555 = vunpack.c.l.b16 %v459
    %v556 = vunpack.c.l.b16 %v460
    %v557 = vunpack.c.l.b16 %v461
    %v558 = vunpack.c.l.b16 %v462
    %v559 = vunpack.c.l.b16 %v463
    %v560 = vunpack.c.l.b16 %v464
    %v561 = vunpack.c.l.b16 %v465
    %v562 = vunpack.c.l.b16 %v466
    %v563 = vunpack.c.l.b16 %v467
    %v564 = vunpack.c.l.b16 %v468
    %v565 = vunpack.c.l.b16 %v469
    %v566 = vunpack.c.l.b16 %v470
    %v567 = vunpack.c.l.b16 %v471
    %v568 = vunpack.c.l.b16 %v472
    %v569 = vunpack.c.l.b16 %v473
    %v570 = vunpack.c.l.b16 %v474
    %v571 = vunpack.c.l.b16 %v475
    %v572 = vunpack.c.l.b16 %v476
    %v573 = vunpack.c.l.b16 %v477
    %v574 = vpack.c.b16 %v527, %v526
    %v575 = vpack.c.b16 %v529, %v528
    %v576 = vpack.c.b16 %v531, %v530
    %v577 = vpack.c.b16 %v533, %v532
    %v578 = vpack.c.b16 %v535, %v534
    %v579 = vpack.c.b16 %v537, %v536
    %v580 = vpack.c.b16 %v539, %v538
    %v581 = vpack.c.b16 %v541, %v540
    %v582 = vpack.c.b16 %v543, %v542
    %v583 = vpack.c.b16 %v545, %v544
    %v584 = vpack.c.b16 %v547, %v546
    %v585 = vpack.c.b16 %v549, %v548
    %v586 = vpack.c.b16 %v551, %v550
    %v587 = vpack.c.b16 %v553, %v552
    %v588 = vpack.c.b16 %v555, %v554
    %v589 = vpack.c.b16 %v557, %v556
    %v590 = vpack.c.b16 %v559, %v558
    %v591 = vpack.c.b16 %v561, %v560
    %v592 = vpack.c.b16 %v563, %v562
    %v593 = vpack.c.b16 %v565, %v564
    %v594 = vpack.c.b16 %v567, %v566
    %v595 = vpack.c.b16 %v569, %v568
    %v596 = vpack.c.b16 %v571, %v570
    %v597 = vpack.c.b16 %v573, %v572
    %622 = vmatpush.bf16.msra.mxu0 %v581
    %623 = vmatpush.bf16.msra.mxu0 %v580
    %624 = vmatpush.bf16.msra.mxu0 %v579
    %625 = vmatpush.bf16.msra.mxu0 %v578
    %626 = vmatpush.bf16.msra.mxu0 %v577
    %627 = vmatpush.bf16.msra.mxu0 %v576
    %628 = vmatpush.bf16.msra.mxu0 %v575
    %629 = vmatpush.bf16.msra.mxu0 %v574
    %630 = vmatmul.bf16.gmra.mxu0 %v427
    %v631 = vpop.f32.mrf.mxu0
    %v632 = vadd.f32 0.0, %v631
    %v633 = vpop.f32.mrf.mxu0
    %v634 = vadd.f32 0.0, %v633
    %635 = vdwg.mxu0
    %636 = vmatpush.bf16.msra.mxu0 %v589
    %637 = vmatpush.bf16.msra.mxu0 %v588
    %638 = vmatpush.bf16.msra.mxu0 %v587
    %639 = vmatpush.bf16.msra.mxu0 %v586
    %640 = vmatpush.bf16.msra.mxu0 %v585
    %641 = vmatpush.bf16.msra.mxu0 %v584
    %642 = vmatpush.bf16.msra.mxu0 %v583
    %643 = vmatpush.bf16.msra.mxu0 %v582
    %644 = vmatmul.bf16.gmra.mxu0 %v428
    %v645 = vpop.f32.mrf.mxu0
    %v646 = vadd.f32 %v632, %v645
    %v647 = vpop.f32.mrf.mxu0
    %v648 = vadd.f32 %v634, %v647
    %649 = vdwg.mxu0
    %650 = vmatpush.bf16.msra.mxu0 %v597
    %651 = vmatpush.bf16.msra.mxu0 %v596
    %652 = vmatpush.bf16.msra.mxu0 %v595
    %653 = vmatpush.bf16.msra.mxu0 %v594
    %654 = vmatpush.bf16.msra.mxu0 %v593
    %655 = vmatpush.bf16.msra.mxu0 %v592
    %656 = vmatpush.bf16.msra.mxu0 %v591
    %657 = vmatpush.bf16.msra.mxu0 %v590
    %658 = vmatmul.bf16.gmra.mxu0 %v429
    %v659 = vpop.f32.mrf.mxu0
    %v660 = vadd.f32 %v646, %v659
    %v661 = vpop.f32.mrf.mxu0
    %v662 = vadd.f32 %v648, %v661
    %663 = vdwg.mxu0
    %v664 = vadd.f32 %v660, %v662
    %v665 = vrot.slane %v664, 4
    %v666 = vadd.f32 %v664, %v665
    %v667 = vrot.slane %v666, 2
    %v668 = vadd.f32 %v666, %v667
    %v669 = vrot.slane %v668, 1
    %v670 = vadd.f32 %v668, %v669
    %671 = vrot.lane.b32.xlu0 %v670, 4
    %v672 = vpop.permute.xlu0 %671
    %v673 = vadd.f32 %v670, %v672
    %674 = vrot.lane.b32.xlu0 %v673, 8
    %v675 = vpop.permute.xlu0 %674
    %v676 = vadd.f32 %v673, %v675
    %677 = vrot.lane.b32.xlu0 %v676, 16
    %v678 = vpop.permute.xlu0 %677
    %v679 = vadd.f32 %v676, %v678
    %680 = vrot.lane.b32.xlu0 %v679, 32
    %v681 = vpop.permute.xlu0 %680
    %v682 = vadd.f32 %v679, %v681
    %683 = vrot.lane.b32.xlu0 %v682, 64
    %v684 = vpop.permute.xlu0 %683
    %v685 = vadd.f32 %v682, %v684
    %v686 = vmul.f32 %v685, 0.001953125
    %v687 = vperm.slane %v686, 0
    %v688 = vsub.f32 %v660, %v687
    %v689 = vsub.f32 %v662, %v687
    %v690 = vmul.f32 %v688, %v688
    %v691 = vmul.f32 %v689, %v689
    %v692 = vadd.f32 %v690, %v691
    %v693 = vrot.slane %v692, 4
    %v694 = vadd.f32 %v692, %v693
    %v695 = vrot.slane %v694, 2
    %v696 = vadd.f32 %v694, %v695
    %v697 = vrot.slane %v696, 1
    %v698 = vadd.f32 %v696, %v697
    %699 = vrot.lane.b32.xlu0 %v698, 4
    %v700 = vpop.permute.xlu0 %699
    %v701 = vadd.f32 %v698, %v700
    %702 = vrot.lane.b32.xlu0 %v701, 8
    %v703 = vpop.permute.xlu0 %702
    %v704 = vadd.f32 %v701, %v703
    %705 = vrot.lane.b32.xlu0 %v704, 16
    %v706 = vpop.permute.xlu0 %705
    %v707 = vadd.f32 %v704, %v706
    %708 = vrot.lane.b32.xlu0 %v707, 32
    %v709 = vpop.permute.xlu0 %708
    %v710 = vadd.f32 %v707, %v709
    %711 = vrot.lane.b32.xlu0 %v710, 64
    %v712 = vpop.permute.xlu0 %711
    %v713 = vadd.f32 %v710, %v712
    %v714 = vmul.f32 %v713, 0.001953125
    %v715 = vld [vmem:[#allocation8] sm:$0x1]
    %v716 = vadd.f32 %v714, 1e-05
    %v717 = vrsqrt.pop %v716
    %v718 = vmul.f32 %v717, %v716
    %v719 = vmul.f32 %v718, %v717
    %v720 = vmul.f32 0.5, %v719
    %v721 = vsub.f32 1.5, %v720
    %v722 = vmul.f32 %v717, %v721
    %vm723 = vweird.f32 %v716
    %vm724 = vweird.f32 %v717
    %vm725 = vmor %vm723, %vm724
    %v726 = vsel %vm725, %v717, %v722
    %v727 = vmul.f32 %v715, %v726
    %v728 = vld [vmem:[#allocation8 + $0x1] sm:$0x1]
    %v729 = vperm.slane %v727, 0
    %v730 = vmul.f32 %v688, %v729
    %v731 = vmul.f32 %v689, %v729
    %v732 = vperm.slane %v728, 0
    %v733 = vadd.f32 %v730, %v732
    %v734 = vadd.f32 %v731, %v732
    %v735 = vadd.f32 %v733, %v82
    %v736 = vadd.f32 %v734, %v83
    %v737 = vmax.f32 %v735, 0.0
    %v738 = vmax.f32 %v736, 0.0
    %739 = vst [vmem:[#allocation10] sm:$0xff] %v737
    %740 = vst [vmem:[#allocation10 + $0x8] sm:$0xff] %v738
    // Predicated region
    $region38: #{tpu_custom_call.1} parent=1 // pred_check
      _
    $region39: #{tpu_custom_call.1} parent=1 // pred_check_branch
      %742 = sbr.rel (0) target = $region41
    $region40: #{tpu_custom_call.1} parent=1 // pred_region
      %744 = vsyncadd [#allocation4], 0
      %s745 = sshll.u32 [#allocation10], 4
      %s746 = int_to_ptr.vmem [resolvable:$true] %s745
      %s747 = sshll.u32 %s5, 4
      %s748 = int_to_ptr.hbm [resolvable:$true] %s747
      %753 = dma.vmem_to_hbm [thread:$0]  %s746, 256, %s748, [#allocation4], 128, 128, 8
    $region41: #{tpu_custom_call.1} parent=1 // pred_fallthru
      _
    // Predicated region
    $region42: #{tpu_custom_call.1} parent=1 // pred_check
      _
    $region43: #{tpu_custom_call.1} parent=1 // pred_check_branch
      %755 = sbr.rel (0) target = $region45
    $region44: #{tpu_custom_call.1} parent=1 // pred_region
      %757 = dma.done [#allocation4], 256
    $region45: #{tpu_custom_call.1} parent=1 // pred_fallthru
      _
    %758 = vsyncpa [#allocation3], 1
    %759 = vsyncpa [#allocation6], 1
    %760 = vsyncpa [#allocation9], 1
    %761 = vsyncpa [#allocation4], 1

</llo_original>
